<compile_context>
chip_gen: v7x
topology: tpu7x:2x2x1
jax: 0.10.0
libtpu: 0.0.40
codegen_flags: <defaults>
</compile_context>

<pallas_src>
import functools
import math

import jax
import jax.numpy as jnp
from jax.experimental import pallas as pl
from jax.experimental.pallas import tpu as pltpu


def _round_up(n, m):
    return ((n + m - 1) // m) * m


def _fused_heads_kernel(x_ref, w_ref, b_ref, out_ref, *, n_actions):
    x = x_ref[...]                                                   # (TB, H) f32

    # Single fused matmul: cols [0, A) = action logits, col A = value, rest = 0-pad.
    y = jnp.dot(x, w_ref[...], preferred_element_type=jnp.float32)  # (TB, Np)
    y = y + b_ref[...]                                               # (1, Np) broadcast

    col = jax.lax.broadcasted_iota(jnp.int32, y.shape, dimension=1)
    action_mask = col < n_actions

    # Numerically-stable softmax restricted to the first n_actions columns.
    neg_large = jnp.finfo(jnp.float32).min
    logits = jnp.where(action_mask, y, neg_large)
    m = jnp.max(logits, axis=-1, keepdims=True)
    e = jnp.exp(logits - m)                                          # padded cols -> 0
    denom = jnp.sum(e, axis=-1, keepdims=True)
    probs = e * pl.reciprocal(denom, approx=False)                   # exact: keeps 1e-5 tol

    # One narrow lane store: probs where col < A, raw linear (value / zero-pad) elsewhere.
    out_ref[...] = jnp.where(action_mask, probs, y).astype(out_ref.dtype)


def pack_heads(wa, ba, wv, bv):
    """Pack both heads into one lane-padded weight/bias pair.  Call ONCE at init.

    wa: (A, H), ba: (A,)   -- action_head weight / bias (PyTorch layout)
    wv: (1, H), bv: (1,)   -- value_head  weight / bias (PyTorch layout)
    Returns (w_packed (H, n_pad), b_packed (1, n_pad), n_actions).
    Columns [0, A) carry the action head, column A the value head, the rest is 0-pad.
    """
    A = wa.shape[0]
    n_pad = _round_up(A + 1, 8)
    w = jnp.concatenate([wa.T, wv.T], axis=1).astype(jnp.float32)        # (H, A+1)
    b = jnp.concatenate([ba, bv], axis=0).astype(jnp.float32)[None, :]   # (1, A+1)
    pad = n_pad - (A + 1)
    if pad:
        w = jnp.pad(w, ((0, 0), (0, pad)))
        b = jnp.pad(b, ((0, 0), (0, pad)))
    return w, b, A


def _pick_block(batch, hidden, n_pad, *, vmem_budget_bytes=16 << 20, max_rows=2048):
    """Fixed row tile; grid = cdiv(B, tb).  No divisibility requirement on B:
    Pallas handles the ragged last block (overhang reads are garbage but per-row
    isolated; overhang writes are dropped)."""
    # Double-buffered x + out tiles, f32.  Budget is conservative enough for
    # v7x's 64 MiB VMEM while still reaching the large-tile HBM-roofline plateau.
    bytes_per_row = 2 * (hidden + n_pad) * 4
    cap = max(8, vmem_budget_bytes // bytes_per_row)
    if batch > 8:
        # Guarantee >= 2 grid steps so the "parallel" batch axis actually feeds
        # both v7x TensorCores (harmless extra ~0.35 us step on v5e/v6e).
        cap = min(cap, max(8, (batch + 1) // 2))
    tb = min(batch, cap, max_rows)
    if tb < batch:
        tb = max(8, (tb // 8) * 8)   # sublane rule: partial blocks need tb % 8 == 0
    return tb


def reinforce_forward(x, w_packed, b_packed, n_actions, *, block_b=None):
    """Fused forward of ReinforceBaseModel's two heads.

    x: (B, H) float32; (w_packed, b_packed, n_actions) from pack_heads().
    Returns (action_prob (B, A), state_values (B, 1)).
    """
    B, H = x.shape
    n_pad = w_packed.shape[1]

    if block_b is None:
        block_b = _pick_block(B, H, n_pad)
    grid = (pl.cdiv(B, block_b),)

    out = pl.pallas_call(
        functools.partial(_fused_heads_kernel, n_actions=n_actions),
        out_shape=jax.ShapeDtypeStruct((B, n_pad), jnp.float32),
        grid=grid,
        in_specs=[
            pl.BlockSpec((block_b, H), lambda i: (i, 0)),    # x rows stream through
            pl.BlockSpec((H, n_pad), lambda i: (0, 0)),      # fused weight, VMEM-resident
            pl.BlockSpec((1, n_pad), lambda i: (0, 0)),      # fused bias row, VMEM-resident
        ],
        out_specs=pl.BlockSpec((block_b, n_pad), lambda i: (i, 0)),
        compiler_params=pltpu.CompilerParams(
            dimension_semantics=("parallel",),               # v7x: shard batch over 2 TCs
            vmem_limit_bytes=32 << 20,                       # explicit; fits v5e/v6e/v7x
        ),
        cost_estimate=pl.CostEstimate(
            flops=2 * B * H * n_pad,
            transcendentals=B * n_pad,
            bytes_accessed=(B * (H + n_pad) + (H + 1) * n_pad) * 4,
        ),
    )(x, w_packed, b_packed)

    # Output is only n_pad(=8) lanes wide, so these slices are near-free.
    return out[:, :n_actions], out[:, n_actions:n_actions + 1]


def init_params(key, hidden_out, n_outputs):
    """Deterministic init mirroring nn.Linear defaults: U(-1/sqrt(fan_in), 1/sqrt(fan_in))."""
    k1, k2, k3, k4 = jax.random.split(key, 4)
    bound = 1.0 / math.sqrt(hidden_out)
    wa = jax.random.uniform(k1, (n_outputs, hidden_out), jnp.float32, -bound, bound)
    ba = jax.random.uniform(k2, (n_outputs,), jnp.float32, -bound, bound)
    wv = jax.random.uniform(k3, (1, hidden_out), jnp.float32, -bound, bound)
    bv = jax.random.uniform(k4, (1,), jnp.float32, -bound, bound)
    return wa, ba, wv, bv


if __name__ == "__main__":
    key = jax.random.PRNGKey(0)
    batch, hidden_out, n_actions = 8, 32, 4   # small shapes consistent with the module

    kx, kp = jax.random.split(key)
    x = jax.random.normal(kx, (batch, hidden_out), jnp.float32)
    wa, ba, wv, bv = init_params(kp, hidden_out, n_actions)

    # Pack the two heads ONCE (init-time), then reuse across forward calls.
    w_packed, b_packed, A = pack_heads(wa, ba, wv, bv)

    probs, vals = reinforce_forward(x, w_packed, b_packed, A)
    jax.block_until_ready((probs, vals))

    # Pure-JAX reference check (mirrors the PyTorch forward).
    logits_ref = x @ wa.T + ba
    probs_ref = jax.nn.softmax(logits_ref, axis=-1)
    vals_ref = x @ wv.T + bv.reshape(1, 1)

    assert probs.shape == (batch, n_actions)
    assert vals.shape == (batch, 1)
    assert jnp.allclose(probs, probs_ref, atol=1e-5), "action_prob mismatch"
    assert jnp.allclose(vals, vals_ref, atol=1e-5), "state_values mismatch"
    assert jnp.allclose(jnp.sum(probs, axis=-1), 1.0, atol=1e-5)

    # Ragged-batch test: B not a multiple of the row tile exercises the partial
    # last block (OOB writes dropped) that the new block heuristic relies on.
    batch2 = 10
    x2 = jax.random.normal(jax.random.PRNGKey(7), (batch2, hidden_out), jnp.float32)
    probs2, vals2 = reinforce_forward(x2, w_packed, b_packed, A)
    jax.block_until_ready((probs2, vals2))
    probs2_ref = jax.nn.softmax(x2 @ wa.T + ba, axis=-1)
    vals2_ref = x2 @ wv.T + bv.reshape(1, 1)
    assert jnp.allclose(probs2, probs2_ref, atol=1e-5), "ragged action_prob mismatch"
    assert jnp.allclose(vals2, vals2_ref, atol=1e-5), "ragged state_values mismatch"

    print("KERNEL_OK")
</pallas_src>

<mosaic_0001>
module attributes {stable_mosaic.version = 11 : i64} {
  func.func @_fused_heads_kernel(%arg0: i32, %arg1: memref<8x32xf32, #tpu.memory_space<vmem>>, %arg2: memref<32x8xf32, #tpu.memory_space<vmem>>, %arg3: memref<1x8xf32, #tpu.memory_space<vmem>>, %arg4: memref<8x8xf32, #tpu.memory_space<vmem>>) attributes {dimension_semantics = [#tpu.dimension_semantics<parallel>], iteration_bounds = array<i64: 1>, scalar_prefetch = 0 : i64, scratch_operands = 0 : i64, tpu.core_type = #tpu.core_type<tc>, window_params = [{transform_indices = @transform_0, window_bounds = array<i64: 8, 32>}, {pipeline_mode = #tpu.pipeline_mode<synchronous>, transform_indices = @transform_1, window_bounds = array<i64: 32, 8>}, {pipeline_mode = #tpu.pipeline_mode<synchronous>, transform_indices = @transform_2, window_bounds = array<i64: 1, 8>}, {transform_indices = @transform_3, window_bounds = array<i64: 8, 8>}]} {
    %c0 = arith.constant 0 : index
    %c0_0 = arith.constant 0 : index
    %0 = vector.load %arg1[%c0, %c0_0] : memref<8x32xf32, #tpu.memory_space<vmem>>, vector<8x32xf32>
    %c0_1 = arith.constant 0 : index
    %c0_2 = arith.constant 0 : index
    %1 = vector.load %arg2[%c0_1, %c0_2] : memref<32x8xf32, #tpu.memory_space<vmem>>, vector<32x8xf32>
    %cst = arith.constant dense<0.000000e+00> : vector<8x8xf32>
    %2 = tpu.matmul %0, %1, %cst {dimension_numbers = #tpu.dot_dimension_numbers<[1], [0], [0], [1], [0, 0, 1, 1], [], []>} : vector<8x32xf32>, vector<32x8xf32>, vector<8x8xf32> -> vector<8x8xf32>
    %c0_3 = arith.constant 0 : index
    %c0_4 = arith.constant 0 : index
    %3 = vector.load %arg3[%c0_3, %c0_4] : memref<1x8xf32, #tpu.memory_space<vmem>>, vector<1x8xf32>
    %4 = vector.broadcast %3 : vector<1x8xf32> to vector<8x8xf32>
    %5 = arith.addf %2, %4 : vector<8x8xf32>
    %6 = tpu.iota {dimensions = array<i32: 1>} : vector<8x8xi32>
    %c4_i32 = arith.constant 4 : i32
    %7 = vector.broadcast %c4_i32 : i32 to vector<8x8xi32>
    %8 = arith.cmpi slt, %6, %7 : vector<8x8xi32>
    %cst_5 = arith.constant -3.40282347E+38 : f32
    %9 = vector.broadcast %cst_5 : f32 to vector<8x8xf32>
    %10 = arith.select %8, %5, %9 : vector<8x8xi1>, vector<8x8xf32>
    %cst_6 = arith.constant dense<0xFF800000> : vector<8xf32>
    %11 = vector.multi_reduction <maximumf>, %10, %cst_6 [1] : vector<8x8xf32> to vector<8xf32>
    %12 = vector.shape_cast %11 : vector<8xf32> to vector<8x1xf32>
    %13 = vector.broadcast %12 : vector<8x1xf32> to vector<8x8xf32>
    %14 = arith.subf %10, %13 : vector<8x8xf32>
    %15 = math.exp %14 : vector<8x8xf32>
    %cst_7 = arith.constant dense<0.000000e+00> : vector<8xf32>
    %16 = vector.multi_reduction <add>, %15, %cst_7 [1] : vector<8x8xf32> to vector<8xf32>
    %17 = vector.shape_cast %16 : vector<8xf32> to vector<8x1xf32>
    %18 = tpu.reciprocal %17 : vector<8x1xf32> -> vector<8x1xf32>
    %19 = vector.broadcast %18 : vector<8x1xf32> to vector<8x8xf32>
    %20 = arith.mulf %15, %19 : vector<8x8xf32>
    %21 = arith.select %8, %20, %5 : vector<8x8xi1>, vector<8x8xf32>
    %c0_8 = arith.constant 0 : index
    %c0_9 = arith.constant 0 : index
    %22 = vector.load %arg4[%c0_8, %c0_9] : memref<8x8xf32, #tpu.memory_space<vmem>>, vector<8x8xf32>
    tpu.vector_store %arg4[%c0_8, %c0_9], %21 {strides = array<i32>} : memref<8x8xf32, #tpu.memory_space<vmem>>, vector<8x8xf32>,
    return
  }
  func.func @transform_0(%arg0: i32) -> (i32, i32) {
    %c0_i32 = arith.constant 0 : i32
    %c0_i32_0 = arith.constant 0 : i32
    return %arg0, %c0_i32 : i32, i32
  }
  func.func @transform_1(%arg0: i32) -> (i32, i32) {
    %c0_i32 = arith.constant 0 : i32
    %c0_i32_0 = arith.constant 0 : i32
    %c0_i32_1 = arith.constant 0 : i32
    return %c0_i32, %c0_i32_0 : i32, i32
  }
  func.func @transform_2(%arg0: i32) -> (i32, i32) {
    %c0_i32 = arith.constant 0 : i32
    %c0_i32_0 = arith.constant 0 : i32
    %c0_i32_1 = arith.constant 0 : i32
    return %c0_i32, %c0_i32_0 : i32, i32
  }
  func.func @transform_3(%arg0: i32) -> (i32, i32) {
    %c0_i32 = arith.constant 0 : i32
    %c0_i32_0 = arith.constant 0 : i32
    return %arg0, %c0_i32 : i32, i32
  }
}

</mosaic_0001>

<llo_original>
// kernel: tpu_custom_call.1
$region0: #{tpu_custom_call.1}
  #allocation0 [shape = 'u32[]', space=smem, size = 0x4, offset = 0x4, fixed_abs, tag = 'smem constant byte address 0x4 - core index']
  #allocation1 [shape = 'u32[144,128]{1,0:T(1,128)}', space=vmem, size = 0x12000, scoped, tag = 'internal scratch']
  %s0 = inlined_call_operand.vmem [shape: f32[8,32], index: 0, kind: input, shape index: {}]
  %s1 = inlined_call_operand.vmem [shape: f32[32,8], index: 1, kind: input, shape index: {}]
  %s2 = inlined_call_operand.vmem [shape: f32[1,8], index: 2, kind: input, shape index: {}]
  %s3 = inlined_call_operand.hbm [shape: f32[8,8], index: 3, kind: output, shape index: {}]
  %s4 = sld [smem:[#allocation0]]
  $region22: #{tpu_custom_call.1} parent=0
    _
  %s6 = ssub.s32 1, %s4
  %s7 = scalar_select 0, %s6, %s4
  $region1: #{tpu_custom_call.1} parent=0
    #allocation2 [shape = 'u8[4096]{0}', space=vmem, size = 0x1000, scoped, tag = 'output window, operand 0, single buffered']
    #allocation3 [shape = 's32[1]{0}', space=sflag, size = 0x4, scoped, tag = 'scoped memory for tpu_custom_call.1']
    %8 = vsyncpa [#allocation3], 0
    // Predicated region
    $region2: #{tpu_custom_call.1} parent=1 // pred_check
      _
    $region3: #{tpu_custom_call.1} parent=1 // pred_check_branch
      %10 = sbr.rel (0) target = $region5
    $region4: #{tpu_custom_call.1} parent=1 // pred_region
      _
    $region5: #{tpu_custom_call.1} parent=1 // pred_fallthru
      _
    // Predicated region
    $region6: #{tpu_custom_call.1} parent=1 // pred_check
      _
    $region7: #{tpu_custom_call.1} parent=1 // pred_check_branch
      %12 = sbr.rel (0) target = $region9
    $region8: #{tpu_custom_call.1} parent=1 // pred_region
      _
    $region9: #{tpu_custom_call.1} parent=1 // pred_fallthru
      _
    // Predicated region
    $region10: #{tpu_custom_call.1} parent=1 // pred_check
      _
    $region11: #{tpu_custom_call.1} parent=1 // pred_check_branch
      %14 = sbr.rel (0) target = $region13
    $region12: #{tpu_custom_call.1} parent=1 // pred_region
      _
    $region13: #{tpu_custom_call.1} parent=1 // pred_fallthru
      _
    %v15 = vld [vmem:[%s0] sm:$0xff]
    %v16 = vld [vmem:[%s1] sm:$0xff]
    %v17 = vld [vmem:[%s1 + $0x8] sm:$0xff]
    %v18 = vld [vmem:[%s1 + $0x10] sm:$0xff]
    %v19 = vld [vmem:[%s1 + $0x18] sm:$0xff]
    %v20 = vld [vmem:[%s2] sm:$0x1]
    %v22 = vlaneseq
    %v23 = vshrl.u32 %v22, 7
    %v24 = vsub.s32 0, %v23
    %v25 = vrot.slane %v20, %v24
    %vm27 = vcmask 261120
    %v29 = vsel %vm27, %v15, 0
    %31 = vmatprep.subr.mxu0 0.0
    %32 = vmatpush1.msra.mxu0 %v16
    %33 = vmatprep.subr.mxu0 0.0
    %34 = vmatpush1.msra.mxu0 %v17
    %35 = vmatprep.subr.mxu0 0.0
    %36 = vmatpush1.msra.mxu0 %v18
    %37 = vmatprep.subr.mxu0 0.0
    %38 = vmatpush1.msra.mxu0 %v19
    %39 = vmatprep.subr.mxu0 0.0
    %40 = vmatpush1.msra.mxu0 0.0
    %41 = vmatprep.subr.mxu0 0.0
    %42 = vmatpush1.msra.mxu0 0.0
    %43 = vmatprep.subr.mxu0 0.0
    %44 = vmatpush1.msra.mxu0 0.0
    %45 = vmatprep.subr.mxu0 0.0
    %46 = vmatpush1.msra.mxu0 0.0
    %47 = vmatprep.subr.mxu0 0.0
    %48 = vmatpush1.msra.mxu0 0.0
    %49 = vmatprep.subr.mxu0 0.0
    %50 = vmatpush1.msra.mxu0 0.0
    %51 = vmatprep.subr.mxu0 0.0
    %52 = vmatpush1.msra.mxu0 0.0
    %53 = vmatprep.subr.mxu0 0.0
    %54 = vmatpush1.msra.mxu0 0.0
    %55 = vmatprep.subr.mxu0 0.0
    %56 = vmatpush1.msra.mxu0 0.0
    %57 = vmatprep.subr.mxu0 0.0
    %58 = vmatpush1.msra.mxu0 0.0
    %59 = vmatprep.subr.mxu0 0.0
    %60 = vmatpush1.msra.mxu0 0.0
    %61 = vmatprep.subr.mxu0 0.0
    %62 = vmatpush1.msra.mxu0 0.0
    %63 = vmatprep.subr.mxu0 0.0
    %64 = vmatpush1.msra.mxu0 0.0
    %65 = vmatprep.subr.mxu0 0.0
    %66 = vmatpush1.msra.mxu0 0.0
    %67 = vmatprep.subr.mxu0 0.0
    %68 = vmatpush1.msra.mxu0 0.0
    %69 = vmatprep.subr.mxu0 0.0
    %70 = vmatpush1.msra.mxu0 0.0
    %71 = vmatprep.subr.mxu0 0.0
    %72 = vmatpush1.msra.mxu0 0.0
    %73 = vmatprep.subr.mxu0 0.0
    %74 = vmatpush1.msra.mxu0 0.0
    %75 = vmatprep.subr.mxu0 0.0
    %76 = vmatpush1.msra.mxu0 0.0
    %77 = vmatprep.subr.mxu0 0.0
    %78 = vmatpush1.msra.mxu0 0.0
    %79 = vmatprep.subr.mxu0 0.0
    %80 = vmatpush1.msra.mxu0 0.0
    %81 = vmatprep.subr.mxu0 0.0
    %82 = vmatpush1.msra.mxu0 0.0
    %83 = vmatprep.subr.mxu0 0.0
    %84 = vmatpush1.msra.mxu0 0.0
    %85 = vmatprep.subr.mxu0 0.0
    %86 = vmatpush1.msra.mxu0 0.0
    %87 = vmatprep.subr.mxu0 0.0
    %88 = vmatpush1.msra.mxu0 0.0
    %89 = vmatprep.subr.mxu0 0.0
    %90 = vmatpush1.msra.mxu0 0.0
    %91 = vmatprep.subr.mxu0 0.0
    %92 = vmatpush1.msra.mxu0 0.0
    %93 = vmatprep.subr.mxu0 0.0
    %94 = vmatpush1.msra.mxu0 0.0
    %95 = vmatprep.mubr.f32.mxu0 0.0
    %96 = vmatmul.mubr.f32.gmra.mrb[0].mxu0 %v29
    %v97 = vpop.f32.mrb[0].mxu0
    %v98 = vadd.f32 %v25, %v97
    %v99 = vpop.f32.mrb[0].mxu0
    %100 = vdwg.mxu0
    %v101 = vlaneseq
    %v102 = vand.u32 %v101, 127
    %vm103 = vcmp.lt.s32.totalorder %v102, 4
    %v104 = vsel %vm103, %v98, -3.4028235e+38
    %vm105 = vcmask 64512
    %v106 = vsel %vm105, %v104, -inf
    %107 = vmax.xlane.f32.xlu0 %v106
    %v108 = vpop.xlane.xlu0 %107
    %v109 = vsub.f32 %v104, %v108
    %v110 = vmul.f32 %v109, 1.442695
    %v111 = vpow.pop %v110
    %v112 = vsel %vm105, %v111, 0.0
    %113 = vadd.xlane.f32.xlu0 %v112
    %v114 = vpop.xlane.xlu0 %113
    %v115 = vrcp.pop %v114
    %v116 = vmul.f32 %v111, %v115
    %v117 = vsel %vm103, %v116, %v98
    %118 = vst.msk [vmem:[#allocation2] sm:$0xff] %vm105, %v117
    // Predicated region
    $region14: #{tpu_custom_call.1} parent=1 // pred_check
      _
    $region15: #{tpu_custom_call.1} parent=1 // pred_check_branch
      %120 = sbr.rel (0) target = $region17
    $region16: #{tpu_custom_call.1} parent=1 // pred_region
      %s122 = ssub.s32 128, 128
      %123 = vsyncadd [#allocation3], %s122
      %s125 = sshll.u32 [#allocation2], 4
      %s126 = int_to_ptr.vmem [resolvable:$true] %s125
      %128 = dma.vmem_to_hbm [thread:$0]  %s126, 128, %s3, [#allocation3]
    $region17: #{tpu_custom_call.1} parent=1 // pred_fallthru
      _
    // Predicated region
    $region18: #{tpu_custom_call.1} parent=1 // pred_check
      _
    $region19: #{tpu_custom_call.1} parent=1 // pred_check_branch
      %130 = sbr.rel (0) target = $region21
    $region20: #{tpu_custom_call.1} parent=1 // pred_region
      %131 = dma.done [#allocation3], 128
    $region21: #{tpu_custom_call.1} parent=1 // pred_fallthru
      _
    %132 = vsyncpa [#allocation3], 1

</llo_original>
